<compile_context>
chip_gen: v5e
topology: v5e:2x2
jax: 0.10.0
libtpu: 0.0.40
codegen_flags: <defaults>
</compile_context>

<pallas_src>
import jax
import jax.numpy as jnp
from jax.experimental import pallas as pl
from jax.experimental.pallas import tpu as pltpu


# ---------------------------------------------------------------------------
# Fused encoder kernel: conv1 + ReLU + conv2 + ReLU for ONE batch element.
# ---------------------------------------------------------------------------
def _fused_encoder_kernel(x_ref, g1_ref, c1_ref, b1_ref,
                          g2_ref, c2_ref, b2_ref, o_ref):
    # x_ref : (1, H, W)            f32   one input image (Cin = 1)
    # g1_ref: (3, 16*H1, H)        f32   folded conv1 weights (per kw)
    # c1_ref: (3, W, W1)           f32   conv1 column-selection (per kw)
    # b1_ref: (16*H1, 1)           f32   conv1 bias, repeated per output row
    # g2_ref: (3, 8*H2, 16*H1)     f32   folded conv2 weights (per kw)
    # c2_ref: (3, W1, W2)          f32   conv2 column-selection (per kw)
    # b2_ref: (8*H2, 1)            f32
    # o_ref : (1, 8*H2, W2)        f32   channel-major-stacked output
    x = x_ref[0]                                       # (H, W)

    # ---- Conv1 + ReLU (stays entirely in vregs) ----
    acc1 = None
    for kw in range(3):
        t = jnp.dot(x, c1_ref[kw], preferred_element_type=jnp.float32)   # (H, W1)
        t = jnp.dot(g1_ref[kw], t, preferred_element_type=jnp.float32)   # (16*H1, W1)
        acc1 = t if acc1 is None else acc1 + t
    h = jnp.maximum(acc1 + b1_ref[...], 0.0)           # (16*H1, W1)

    # ---- Conv2 + ReLU ----
    acc2 = None
    for kw in range(3):
        t = jnp.dot(h, c2_ref[kw], preferred_element_type=jnp.float32)   # (16*H1, W2)
        t = jnp.dot(g2_ref[kw], t, preferred_element_type=jnp.float32)   # (8*H2, W2)
        acc2 = t if acc2 is None else acc2 + t
    y = jnp.maximum(acc2 + b2_ref[...], 0.0)           # (8*H2, W2)

    o_ref[0] = y.astype(o_ref.dtype)


# ---------------------------------------------------------------------------
# Fold a stride-2 / pad-1 / 3x3 conv into (G_kw, C_kw) matrices (tiny arrays,
# built once in plain JAX from the conv weights).
#   conv(x)[c, i, j] = sum_kw ( G_kw @ Xstack @ C_kw )[c*H_out + i, j]
# ---------------------------------------------------------------------------
def _fold_conv(w, h_in, h_out, w_in, w_out):
    # w: (Cout, Cin, 3, 3)
    f32 = jnp.float32
    i = jnp.arange(h_out)[:, None]      # output row index
    r = jnp.arange(h_in)[None, :]       # input row index
    s = jnp.arange(w_in)[:, None]       # input col index
    j = jnp.arange(w_out)[None, :]      # output col index
    gs, cs = [], []
    for kw in range(3):
        g = None
        for kh in range(3):
            # R_kh[i, r] = 1  iff  r == 2*i + kh - 1  (stride 2, pad 1; rows
            # that fall outside [0, h_in) simply never match -> zero padding).
            sel_rows = (r == 2 * i + kh - 1).astype(f32)          # (H_out, H_in)
            term = jnp.kron(w[:, :, kh, kw].astype(f32), sel_rows)
            g = term if g is None else g + term                   # (Cout*H_out, Cin*H_in)
        gs.append(g)
        # C_kw[s, j] = 1 iff s == 2*j + kw - 1
        cs.append((s == 2 * j + kw - 1).astype(f32))              # (W_in, W_out)
    return jnp.stack(gs), jnp.stack(cs)


# ---------------------------------------------------------------------------
# Encoder: parameters + forward
# ---------------------------------------------------------------------------
def init_encoder_params(seed=0):
    key = jax.random.PRNGKey(seed)
    k1, k2, k3, k4 = jax.random.split(key, 4)
    fan1 = 1 * 3 * 3
    fan2 = 16 * 3 * 3
    w1 = jax.random.uniform(k1, (16, 1, 3, 3), jnp.float32,
                            -1.0 / jnp.sqrt(fan1), 1.0 / jnp.sqrt(fan1))
    b1 = jax.random.uniform(k2, (16,), jnp.float32,
                            -1.0 / jnp.sqrt(fan1), 1.0 / jnp.sqrt(fan1))
    w2 = jax.random.uniform(k3, (8, 16, 3, 3), jnp.float32,
                            -1.0 / jnp.sqrt(fan2), 1.0 / jnp.sqrt(fan2))
    b2 = jax.random.uniform(k4, (8,), jnp.float32,
                            -1.0 / jnp.sqrt(fan2), 1.0 / jnp.sqrt(fan2))
    return {"w1": w1, "b1": b1, "w2": w2, "b2": b2}


def encoder_forward(params, x):
    """x: (N, 1, H, W) f32 -> (N, 8, ceil(H/4), ceil(W/4)) f32 (NCHW)."""
    n, cin, h, w = x.shape
    assert cin == 1
    h1 = (h - 1) // 2 + 1
    w1_ = (w - 1) // 2 + 1
    h2 = (h1 - 1) // 2 + 1
    w2_ = (w1_ - 1) // 2 + 1
    c1o = params["w1"].shape[0]          # 16
    c2o = params["w2"].shape[0]          # 8

    # Tiny, weight-only fold (done once; independent of the batch data).
    g1, c1 = _fold_conv(params["w1"], h, h1, w, w1_)       # (3, 16*H1, H), (3, W, W1)
    g2, c2 = _fold_conv(params["w2"], h1, h2, w1_, w2_)    # (3, 8*H2, 16*H1), (3, W1, W2)
    b1c = jnp.repeat(params["b1"], h1).reshape(c1o * h1, 1).astype(jnp.float32)
    b2c = jnp.repeat(params["b2"], h2).reshape(c2o * h2, 1).astype(jnp.float32)

    x3 = x.reshape(n, h, w)              # drop the size-1 channel dim (free)

    out = pl.pallas_call(
        _fused_encoder_kernel,
        out_shape=jax.ShapeDtypeStruct((n, c2o * h2, w2_), jnp.float32),
        grid_spec=pltpu.PrefetchScalarGridSpec(
            num_scalar_prefetch=0,
            grid=(n,),
            in_specs=[
                pl.BlockSpec((1, h, w), lambda i: (i, 0, 0)),        # one image / step
                pl.BlockSpec(g1.shape, lambda i: (0, 0, 0)),         # weights resident
                pl.BlockSpec(c1.shape, lambda i: (0, 0, 0)),
                pl.BlockSpec(b1c.shape, lambda i: (0, 0)),
                pl.BlockSpec(g2.shape, lambda i: (0, 0, 0)),
                pl.BlockSpec(c2.shape, lambda i: (0, 0, 0)),
                pl.BlockSpec(b2c.shape, lambda i: (0, 0)),
            ],
            out_specs=pl.BlockSpec((1, c2o * h2, w2_), lambda i: (i, 0, 0)),
        ),
        compiler_params=pltpu.CompilerParams(
            dimension_semantics=("parallel",),   # batch steps shard over v7x's 2 TCs
        ),
    )(x3, g1, c1, b1c, g2, c2, b2c)

    return out.reshape(n, c2o, h2, w2_)          # tiny final tensor -> NCHW


# Pure-JAX reference for correctness checking (same semantics as PyTorch).
def _encoder_ref(params, x):
    def conv(x, w, b):
        y = jax.lax.conv_general_dilated(
            x, w, window_strides=(2, 2), padding=((1, 1), (1, 1)),
            dimension_numbers=("NCHW", "OIHW", "NCHW"))
        return jnp.maximum(y + b.reshape(1, -1, 1, 1), 0.0)
    return conv(conv(x, params["w1"], params["b1"]), params["w2"], params["b2"])


if __name__ == "__main__":
    key = jax.random.PRNGKey(0)
    x = jax.random.normal(key, (2, 1, 16, 16), dtype=jnp.float32)

    params = init_encoder_params(seed=0)

    fwd = jax.jit(encoder_forward)
    out = jax.block_until_ready(fwd(params, x))

    assert out.shape == (2, 8, 4, 4), out.shape

    ref = jax.block_until_ready(_encoder_ref(params, x))
    # MXU default precision (bf16 passes) with f32 accumulation: loose-ish tol.
    assert jnp.allclose(out, ref, atol=2e-2, rtol=2e-2), "mismatch vs reference"

    print("KERNEL_OK")
</pallas_src>

<mosaic_0001>
module attributes {stable_mosaic.version = 11 : i64} {
  func.func @_fused_encoder_kernel(%arg0: i32, %arg1: memref<1x16x16xf32, #tpu.memory_space<vmem>>, %arg2: memref<3x128x16xf32, #tpu.memory_space<vmem>>, %arg3: memref<3x16x8xf32, #tpu.memory_space<vmem>>, %arg4: memref<128x1xf32, #tpu.memory_space<vmem>>, %arg5: memref<3x32x128xf32, #tpu.memory_space<vmem>>, %arg6: memref<3x8x4xf32, #tpu.memory_space<vmem>>, %arg7: memref<32x1xf32, #tpu.memory_space<vmem>>, %arg8: memref<1x32x4xf32, #tpu.memory_space<vmem>>) attributes {dimension_semantics = [#tpu.dimension_semantics<parallel>], iteration_bounds = array<i64: 2>, scalar_prefetch = 0 : i64, scratch_operands = 0 : i64, tpu.core_type = #tpu.core_type<tc>, window_params = [{transform_indices = @transform_0, window_bounds = array<i64: 1, 16, 16>}, {pipeline_mode = #tpu.pipeline_mode<synchronous>, transform_indices = @transform_1, window_bounds = array<i64: 3, 128, 16>}, {pipeline_mode = #tpu.pipeline_mode<synchronous>, transform_indices = @transform_2, window_bounds = array<i64: 3, 16, 8>}, {pipeline_mode = #tpu.pipeline_mode<synchronous>, transform_indices = @transform_3, window_bounds = array<i64: 128, 1>}, {pipeline_mode = #tpu.pipeline_mode<synchronous>, transform_indices = @transform_4, window_bounds = array<i64: 3, 32, 128>}, {pipeline_mode = #tpu.pipeline_mode<synchronous>, transform_indices = @transform_5, window_bounds = array<i64: 3, 8, 4>}, {pipeline_mode = #tpu.pipeline_mode<synchronous>, transform_indices = @transform_6, window_bounds = array<i64: 32, 1>}, {transform_indices = @transform_7, window_bounds = array<i64: 1, 32, 4>}]} {
    %c0 = arith.constant 0 : index
    %c0_0 = arith.constant 0 : index
    %c0_1 = arith.constant 0 : index
    %0 = vector.load %arg1[%c0, %c0_0, %c0_1] : memref<1x16x16xf32, #tpu.memory_space<vmem>>, vector<1x16x16xf32>
    %1 = vector.shape_cast %0 : vector<1x16x16xf32> to vector<16x16xf32>
    %c0_2 = arith.constant 0 : index
    %c0_3 = arith.constant 0 : index
    %c0_4 = arith.constant 0 : index
    %2 = vector.load %arg3[%c0_2, %c0_3, %c0_4] : memref<3x16x8xf32, #tpu.memory_space<vmem>>, vector<1x16x8xf32>
    %3 = vector.shape_cast %2 : vector<1x16x8xf32> to vector<16x8xf32>
    %cst = arith.constant dense<0.000000e+00> : vector<16x8xf32>
    %4 = tpu.matmul %1, %3, %cst {dimension_numbers = #tpu.dot_dimension_numbers<[1], [0], [0], [1], [0, 0, 1, 1], [], []>} : vector<16x16xf32>, vector<16x8xf32>, vector<16x8xf32> -> vector<16x8xf32>
    %c0_5 = arith.constant 0 : index
    %c0_6 = arith.constant 0 : index
    %c0_7 = arith.constant 0 : index
    %5 = vector.load %arg2[%c0_5, %c0_6, %c0_7] : memref<3x128x16xf32, #tpu.memory_space<vmem>>, vector<1x128x16xf32>
    %6 = vector.shape_cast %5 : vector<1x128x16xf32> to vector<128x16xf32>
    %cst_8 = arith.constant dense<0.000000e+00> : vector<128x8xf32>
    %7 = tpu.matmul %6, %4, %cst_8 {dimension_numbers = #tpu.dot_dimension_numbers<[1], [0], [0], [1], [0, 0, 1, 1], [], []>} : vector<128x16xf32>, vector<16x8xf32>, vector<128x8xf32> -> vector<128x8xf32>
    %c1 = arith.constant 1 : index
    %c0_9 = arith.constant 0 : index
    %c0_10 = arith.constant 0 : index
    %8 = vector.load %arg3[%c1, %c0_9, %c0_10] : memref<3x16x8xf32, #tpu.memory_space<vmem>>, vector<1x16x8xf32>
    %9 = vector.shape_cast %8 : vector<1x16x8xf32> to vector<16x8xf32>
    %cst_11 = arith.constant dense<0.000000e+00> : vector<16x8xf32>
    %10 = tpu.matmul %1, %9, %cst_11 {dimension_numbers = #tpu.dot_dimension_numbers<[1], [0], [0], [1], [0, 0, 1, 1], [], []>} : vector<16x16xf32>, vector<16x8xf32>, vector<16x8xf32> -> vector<16x8xf32>
    %c1_12 = arith.constant 1 : index
    %c0_13 = arith.constant 0 : index
    %c0_14 = arith.constant 0 : index
    %11 = vector.load %arg2[%c1_12, %c0_13, %c0_14] : memref<3x128x16xf32, #tpu.memory_space<vmem>>, vector<1x128x16xf32>
    %12 = vector.shape_cast %11 : vector<1x128x16xf32> to vector<128x16xf32>
    %cst_15 = arith.constant dense<0.000000e+00> : vector<128x8xf32>
    %13 = tpu.matmul %12, %10, %cst_15 {dimension_numbers = #tpu.dot_dimension_numbers<[1], [0], [0], [1], [0, 0, 1, 1], [], []>} : vector<128x16xf32>, vector<16x8xf32>, vector<128x8xf32> -> vector<128x8xf32>
    %14 = arith.addf %7, %13 : vector<128x8xf32>
    %c2 = arith.constant 2 : index
    %c0_16 = arith.constant 0 : index
    %c0_17 = arith.constant 0 : index
    %15 = vector.load %arg3[%c2, %c0_16, %c0_17] : memref<3x16x8xf32, #tpu.memory_space<vmem>>, vector<1x16x8xf32>
    %16 = vector.shape_cast %15 : vector<1x16x8xf32> to vector<16x8xf32>
    %cst_18 = arith.constant dense<0.000000e+00> : vector<16x8xf32>
    %17 = tpu.matmul %1, %16, %cst_18 {dimension_numbers = #tpu.dot_dimension_numbers<[1], [0], [0], [1], [0, 0, 1, 1], [], []>} : vector<16x16xf32>, vector<16x8xf32>, vector<16x8xf32> -> vector<16x8xf32>
    %c2_19 = arith.constant 2 : index
    %c0_20 = arith.constant 0 : index
    %c0_21 = arith.constant 0 : index
    %18 = vector.load %arg2[%c2_19, %c0_20, %c0_21] : memref<3x128x16xf32, #tpu.memory_space<vmem>>, vector<1x128x16xf32>
    %19 = vector.shape_cast %18 : vector<1x128x16xf32> to vector<128x16xf32>
    %cst_22 = arith.constant dense<0.000000e+00> : vector<128x8xf32>
    %20 = tpu.matmul %19, %17, %cst_22 {dimension_numbers = #tpu.dot_dimension_numbers<[1], [0], [0], [1], [0, 0, 1, 1], [], []>} : vector<128x16xf32>, vector<16x8xf32>, vector<128x8xf32> -> vector<128x8xf32>
    %21 = arith.addf %14, %20 : vector<128x8xf32>
    %c0_23 = arith.constant 0 : index
    %c0_24 = arith.constant 0 : index
    %22 = vector.load %arg4[%c0_23, %c0_24] : memref<128x1xf32, #tpu.memory_space<vmem>>, vector<128x1xf32>
    %23 = vector.broadcast %22 : vector<128x1xf32> to vector<128x8xf32>
    %24 = arith.addf %21, %23 : vector<128x8xf32>
    %cst_25 = arith.constant 0.000000e+00 : f32
    %25 = vector.broadcast %cst_25 : f32 to vector<128x8xf32>
    %26 = arith.maximumf %24, %25 : vector<128x8xf32>
    %c0_26 = arith.constant 0 : index
    %c0_27 = arith.constant 0 : index
    %c0_28 = arith.constant 0 : index
    %27 = vector.load %arg6[%c0_26, %c0_27, %c0_28] : memref<3x8x4xf32, #tpu.memory_space<vmem>>, vector<1x8x4xf32>
    %28 = vector.shape_cast %27 : vector<1x8x4xf32> to vector<8x4xf32>
    %cst_29 = arith.constant dense<0.000000e+00> : vector<128x4xf32>
    %29 = tpu.matmul %26, %28, %cst_29 {dimension_numbers = #tpu.dot_dimension_numbers<[1], [0], [0], [1], [0, 0, 1, 1], [], []>} : vector<128x8xf32>, vector<8x4xf32>, vector<128x4xf32> -> vector<128x4xf32>
    %c0_30 = arith.constant 0 : index
    %c0_31 = arith.constant 0 : index
    %c0_32 = arith.constant 0 : index
    %30 = vector.load %arg5[%c0_30, %c0_31, %c0_32] : memref<3x32x128xf32, #tpu.memory_space<vmem>>, vector<1x32x128xf32>
    %31 = vector.shape_cast %30 : vector<1x32x128xf32> to vector<32x128xf32>
    %cst_33 = arith.constant dense<0.000000e+00> : vector<32x4xf32>
    %32 = tpu.matmul %31, %29, %cst_33 {dimension_numbers = #tpu.dot_dimension_numbers<[1], [0], [0], [1], [0, 0, 1, 1], [], []>} : vector<32x128xf32>, vector<128x4xf32>, vector<32x4xf32> -> vector<32x4xf32>
    %c1_34 = arith.constant 1 : index
    %c0_35 = arith.constant 0 : index
    %c0_36 = arith.constant 0 : index
    %33 = vector.load %arg6[%c1_34, %c0_35, %c0_36] : memref<3x8x4xf32, #tpu.memory_space<vmem>>, vector<1x8x4xf32>
    %34 = vector.shape_cast %33 : vector<1x8x4xf32> to vector<8x4xf32>
    %cst_37 = arith.constant dense<0.000000e+00> : vector<128x4xf32>
    %35 = tpu.matmul %26, %34, %cst_37 {dimension_numbers = #tpu.dot_dimension_numbers<[1], [0], [0], [1], [0, 0, 1, 1], [], []>} : vector<128x8xf32>, vector<8x4xf32>, vector<128x4xf32> -> vector<128x4xf32>
    %c1_38 = arith.constant 1 : index
    %c0_39 = arith.constant 0 : index
    %c0_40 = arith.constant 0 : index
    %36 = vector.load %arg5[%c1_38, %c0_39, %c0_40] : memref<3x32x128xf32, #tpu.memory_space<vmem>>, vector<1x32x128xf32>
    %37 = vector.shape_cast %36 : vector<1x32x128xf32> to vector<32x128xf32>
    %cst_41 = arith.constant dense<0.000000e+00> : vector<32x4xf32>
    %38 = tpu.matmul %37, %35, %cst_41 {dimension_numbers = #tpu.dot_dimension_numbers<[1], [0], [0], [1], [0, 0, 1, 1], [], []>} : vector<32x128xf32>, vector<128x4xf32>, vector<32x4xf32> -> vector<32x4xf32>
    %39 = arith.addf %32, %38 : vector<32x4xf32>
    %c2_42 = arith.constant 2 : index
    %c0_43 = arith.constant 0 : index
    %c0_44 = arith.constant 0 : index
    %40 = vector.load %arg6[%c2_42, %c0_43, %c0_44] : memref<3x8x4xf32, #tpu.memory_space<vmem>>, vector<1x8x4xf32>
    %41 = vector.shape_cast %40 : vector<1x8x4xf32> to vector<8x4xf32>
    %cst_45 = arith.constant dense<0.000000e+00> : vector<128x4xf32>
    %42 = tpu.matmul %26, %41, %cst_45 {dimension_numbers = #tpu.dot_dimension_numbers<[1], [0], [0], [1], [0, 0, 1, 1], [], []>} : vector<128x8xf32>, vector<8x4xf32>, vector<128x4xf32> -> vector<128x4xf32>
    %c2_46 = arith.constant 2 : index
    %c0_47 = arith.constant 0 : index
    %c0_48 = arith.constant 0 : index
    %43 = vector.load %arg5[%c2_46, %c0_47, %c0_48] : memref<3x32x128xf32, #tpu.memory_space<vmem>>, vector<1x32x128xf32>
    %44 = vector.shape_cast %43 : vector<1x32x128xf32> to vector<32x128xf32>
    %cst_49 = arith.constant dense<0.000000e+00> : vector<32x4xf32>
    %45 = tpu.matmul %44, %42, %cst_49 {dimension_numbers = #tpu.dot_dimension_numbers<[1], [0], [0], [1], [0, 0, 1, 1], [], []>} : vector<32x128xf32>, vector<128x4xf32>, vector<32x4xf32> -> vector<32x4xf32>
    %46 = arith.addf %39, %45 : vector<32x4xf32>
    %c0_50 = arith.constant 0 : index
    %c0_51 = arith.constant 0 : index
    %47 = vector.load %arg7[%c0_50, %c0_51] : memref<32x1xf32, #tpu.memory_space<vmem>>, vector<32x1xf32>
    %48 = vector.broadcast %47 : vector<32x1xf32> to vector<32x4xf32>
    %49 = arith.addf %46, %48 : vector<32x4xf32>
    %cst_52 = arith.constant 0.000000e+00 : f32
    %50 = vector.broadcast %cst_52 : f32 to vector<32x4xf32>
    %51 = arith.maximumf %49, %50 : vector<32x4xf32>
    %c0_53 = arith.constant 0 : index
    %c0_54 = arith.constant 0 : index
    %c0_55 = arith.constant 0 : index
    %52 = vector.load %arg8[%c0_53, %c0_54, %c0_55] : memref<1x32x4xf32, #tpu.memory_space<vmem>>, vector<1x32x4xf32>
    %53 = vector.shape_cast %52 : vector<1x32x4xf32> to vector<32x4xf32>
    %54 = vector.shape_cast %51 : vector<32x4xf32> to vector<1x32x4xf32>
    tpu.vector_store %arg8[%c0_53, %c0_54, %c0_55], %54 {strides = array<i32>} : memref<1x32x4xf32, #tpu.memory_space<vmem>>, vector<1x32x4xf32>,
    return
  }
  func.func @transform_0(%arg0: i32) -> (i32, i32, i32) {
    %c0_i32 = arith.constant 0 : i32
    %c0_i32_0 = arith.constant 0 : i32
    %c0_i32_1 = arith.constant 0 : i32
    return %arg0, %c0_i32, %c0_i32_0 : i32, i32, i32
  }
  func.func @transform_1(%arg0: i32) -> (i32, i32, i32) {
    %c0_i32 = arith.constant 0 : i32
    %c0_i32_0 = arith.constant 0 : i32
    %c0_i32_1 = arith.constant 0 : i32
    %c0_i32_2 = arith.constant 0 : i32
    return %c0_i32, %c0_i32_0, %c0_i32_1 : i32, i32, i32
  }
  func.func @transform_2(%arg0: i32) -> (i32, i32, i32) {
    %c0_i32 = arith.constant 0 : i32
    %c0_i32_0 = arith.constant 0 : i32
    %c0_i32_1 = arith.constant 0 : i32
    %c0_i32_2 = arith.constant 0 : i32
    return %c0_i32, %c0_i32_0, %c0_i32_1 : i32, i32, i32
  }
  func.func @transform_3(%arg0: i32) -> (i32, i32) {
    %c0_i32 = arith.constant 0 : i32
    %c0_i32_0 = arith.constant 0 : i32
    %c0_i32_1 = arith.constant 0 : i32
    return %c0_i32, %c0_i32_0 : i32, i32
  }
  func.func @transform_4(%arg0: i32) -> (i32, i32, i32) {
    %c0_i32 = arith.constant 0 : i32
    %c0_i32_0 = arith.constant 0 : i32
    %c0_i32_1 = arith.constant 0 : i32
    %c0_i32_2 = arith.constant 0 : i32
    return %c0_i32, %c0_i32_0, %c0_i32_1 : i32, i32, i32
  }
  func.func @transform_5(%arg0: i32) -> (i32, i32, i32) {
    %c0_i32 = arith.constant 0 : i32
    %c0_i32_0 = arith.constant 0 : i32
    %c0_i32_1 = arith.constant 0 : i32
    %c0_i32_2 = arith.constant 0 : i32
    return %c0_i32, %c0_i32_0, %c0_i32_1 : i32, i32, i32
  }
  func.func @transform_6(%arg0: i32) -> (i32, i32) {
    %c0_i32 = arith.constant 0 : i32
    %c0_i32_0 = arith.constant 0 : i32
    %c0_i32_1 = arith.constant 0 : i32
    return %c0_i32, %c0_i32_0 : i32, i32
  }
  func.func @transform_7(%arg0: i32) -> (i32, i32, i32) {
    %c0_i32 = arith.constant 0 : i32
    %c0_i32_0 = arith.constant 0 : i32
    %c0_i32_1 = arith.constant 0 : i32
    return %arg0, %c0_i32, %c0_i32_0 : i32, i32, i32
  }
}

</mosaic_0001>

<llo_original>
// kernel: encoder_forward.1
$region0: #{encoder_forward.1}
  #allocation0 [shape = 'u32[]', space=smem, size = 0x4, offset = 0x4, fixed_abs, tag = 'smem constant byte address 0x4 - core index']
  #allocation1 [shape = 'u32[72,128]{1,0:T(1,128)}', space=vmem, size = 0x9000, scoped, tag = 'internal scratch']
  %s0 = inlined_call_operand.vmem [shape: f32[2,16,16], index: 0, kind: input, shape index: {}]
  %s1 = inlined_call_operand.vmem [shape: f32[3,128,16], index: 1, kind: input, shape index: {}]
  %s2 = inlined_call_operand.vmem [shape: f32[3,16,8], index: 2, kind: input, shape index: {}]
  %s3 = inlined_call_operand.vmem [shape: f32[128,1], index: 3, kind: input, shape index: {}]
  %s4 = inlined_call_operand.vmem [shape: f32[3,32,128], index: 4, kind: input, shape index: {}]
  %s5 = inlined_call_operand.vmem [shape: f32[3,8,4], index: 5, kind: input, shape index: {}]
  %s6 = inlined_call_operand.vmem [shape: f32[32,1], index: 6, kind: input, shape index: {}]
  %s7 = inlined_call_operand.vmem [shape: f32[2,32,4], index: 7, kind: output, shape index: {}]
  %s8 = sld [smem:[#allocation0]]
  $region61: #{encoder_forward.1} parent=0
    _
  %s10 = ssub.s32 1, %s8
  %s11 = scalar_select 0, %s10, %s8
  loop: start=0, step=1, limit=4
  $region2: #{encoder_forward.1} parent=0 // loop_pre_header
    _
  $region3: #{encoder_forward.1} parent=0 // loop_header
    %s13 = sphi 0, %s17
    %p14 = scmp.ge.s32.totalorder %s13, 4
    %s23 = sphi 0, %s25
    %s26 = sphi 0, %s23
    %s27 = sphi 0, %s26
    %s43 = sphi 0, %s27
    %s47 = sphi 0, %s47
    %s49 = sphi 0, %s47
    %s50 = sphi 0, %s49
    %s64 = sphi 0, %s50
    %s68 = sphi 0, %s68
    %s70 = sphi 0, %s68
    %s71 = sphi 0, %s70
    %s85 = sphi 0, %s71
    %s89 = sphi 0, %s89
    %s91 = sphi 0, %s89
    %s92 = sphi 0, %s91
    %s106 = sphi 0, %s92
    %s110 = sphi 0, %s110
    %s112 = sphi 0, %s110
    %s113 = sphi 0, %s112
    %s127 = sphi 0, %s113
    %s131 = sphi 0, %s131
    %s133 = sphi 0, %s131
    %s134 = sphi 0, %s133
    %s148 = sphi 0, %s134
    %s152 = sphi 0, %s152
    %s154 = sphi 0, %s152
    %s155 = sphi 0, %s154
    %s169 = sphi 0, %s155
    %s175 = sphi 0, %s177
    %s178 = sphi 0, %s175
    %s179 = sphi 0, %s178
    %s195 = sphi 0, %s179
  $region4: #{encoder_forward.1} parent=0 // loop_header_branch
    %16 = sbr.rel (%p14) target = $region8
  $region5: #{encoder_forward.1} parent=0 // loop_body
    %s18 = ssub.s32 %s13, 1
    %s19 = ssub.s32 %s13, 2
    %s20 = sadd.s32 %s13, 1
    %s21 = ssub.s32 %s13, %s20
    %p22 = scmp.eq.s32.totalorder %s21, 0
    %s24 = sadd.s32 %s23, 1
    %s25 = scalar_select %p22, %s23, %s24
    %p28 = pneg %p22
    %p29 = scmp.eq.s32.totalorder %s13, 1
    %p30 = por %p28, %p29
    %p31 = scmp.ne.s32.totalorder %s23, %s26
    %p32 = scmp.eq.s32.totalorder %s13, 0
    %p33 = por %p31, %p32
    %p34 = scmp.ne.s32.totalorder %s23, %s26
    %p35 = scmp.eq.s32.totalorder %s18, 1
    %p36 = por %p34, %p35
    %p37 = scmp.ne.s32.totalorder %s26, %s27
    %p38 = scmp.eq.s32.totalorder %s18, 0
    %p39 = por %p37, %p38
    %p40 = scmp.ne.s32.totalorder %s26, %s27
    %p41 = scmp.eq.s32.totalorder %s19, 1
    %p42 = por %p40, %p41
    %p44 = scmp.ne.s32.totalorder %s27, %s43
    %p45 = scmp.eq.s32.totalorder %s19, 0
    %p46 = por %p44, %p45
    %s48 = sadd.s32 %s47, 1
    %p51 = scmp.eq.s32.totalorder %s13, 1
    %p52 = scmp.ne.s32.totalorder %s47, %s49
    %p53 = scmp.eq.s32.totalorder %s13, 0
    %p54 = por %p52, %p53
    %p55 = scmp.ne.s32.totalorder %s47, %s49
    %p56 = scmp.eq.s32.totalorder %s18, 1
    %p57 = por %p55, %p56
    %p58 = scmp.ne.s32.totalorder %s49, %s50
    %p59 = scmp.eq.s32.totalorder %s18, 0
    %p60 = por %p58, %p59
    %p61 = scmp.ne.s32.totalorder %s49, %s50
    %p62 = scmp.eq.s32.totalorder %s19, 1
    %p63 = por %p61, %p62
    %p65 = scmp.ne.s32.totalorder %s50, %s64
    %p66 = scmp.eq.s32.totalorder %s19, 0
    %p67 = por %p65, %p66
    %s69 = sadd.s32 %s68, 1
    %p72 = scmp.eq.s32.totalorder %s13, 1
    %p73 = scmp.ne.s32.totalorder %s68, %s70
    %p74 = scmp.eq.s32.totalorder %s13, 0
    %p75 = por %p73, %p74
    %p76 = scmp.ne.s32.totalorder %s68, %s70
    %p77 = scmp.eq.s32.totalorder %s18, 1
    %p78 = por %p76, %p77
    %p79 = scmp.ne.s32.totalorder %s70, %s71
    %p80 = scmp.eq.s32.totalorder %s18, 0
    %p81 = por %p79, %p80
    %p82 = scmp.ne.s32.totalorder %s70, %s71
    %p83 = scmp.eq.s32.totalorder %s19, 1
    %p84 = por %p82, %p83
    %p86 = scmp.ne.s32.totalorder %s71, %s85
    %p87 = scmp.eq.s32.totalorder %s19, 0
    %p88 = por %p86, %p87
    %s90 = sadd.s32 %s89, 1
    %p93 = scmp.eq.s32.totalorder %s13, 1
    %p94 = scmp.ne.s32.totalorder %s89, %s91
    %p95 = scmp.eq.s32.totalorder %s13, 0
    %p96 = por %p94, %p95
    %p97 = scmp.ne.s32.totalorder %s89, %s91
    %p98 = scmp.eq.s32.totalorder %s18, 1
    %p99 = por %p97, %p98
    %p100 = scmp.ne.s32.totalorder %s91, %s92
    %p101 = scmp.eq.s32.totalorder %s18, 0
    %p102 = por %p100, %p101
    %p103 = scmp.ne.s32.totalorder %s91, %s92
    %p104 = scmp.eq.s32.totalorder %s19, 1
    %p105 = por %p103, %p104
    %p107 = scmp.ne.s32.totalorder %s92, %s106
    %p108 = scmp.eq.s32.totalorder %s19, 0
    %p109 = por %p107, %p108
    %s111 = sadd.s32 %s110, 1
    %p114 = scmp.eq.s32.totalorder %s13, 1
    %p115 = scmp.ne.s32.totalorder %s110, %s112
    %p116 = scmp.eq.s32.totalorder %s13, 0
    %p117 = por %p115, %p116
    %p118 = scmp.ne.s32.totalorder %s110, %s112
    %p119 = scmp.eq.s32.totalorder %s18, 1
    %p120 = por %p118, %p119
    %p121 = scmp.ne.s32.totalorder %s112, %s113
    %p122 = scmp.eq.s32.totalorder %s18, 0
    %p123 = por %p121, %p122
    %p124 = scmp.ne.s32.totalorder %s112, %s113
    %p125 = scmp.eq.s32.totalorder %s19, 1
    %p126 = por %p124, %p125
    %p128 = scmp.ne.s32.totalorder %s113, %s127
    %p129 = scmp.eq.s32.totalorder %s19, 0
    %p130 = por %p128, %p129
    %s132 = sadd.s32 %s131, 1
    %p135 = scmp.eq.s32.totalorder %s13, 1
    %p136 = scmp.ne.s32.totalorder %s131, %s133
    %p137 = scmp.eq.s32.totalorder %s13, 0
    %p138 = por %p136, %p137
    %p139 = scmp.ne.s32.totalorder %s131, %s133
    %p140 = scmp.eq.s32.totalorder %s18, 1
    %p141 = por %p139, %p140
    %p142 = scmp.ne.s32.totalorder %s133, %s134
    %p143 = scmp.eq.s32.totalorder %s18, 0
    %p144 = por %p142, %p143
    %p145 = scmp.ne.s32.totalorder %s133, %s134
    %p146 = scmp.eq.s32.totalorder %s19, 1
    %p147 = por %p145, %p146
    %p149 = scmp.ne.s32.totalorder %s134, %s148
    %p150 = scmp.eq.s32.totalorder %s19, 0
    %p151 = por %p149, %p150
    %s153 = sadd.s32 %s152, 1
    %p156 = scmp.eq.s32.totalorder %s13, 1
    %p157 = scmp.ne.s32.totalorder %s152, %s154
    %p158 = scmp.eq.s32.totalorder %s13, 0
    %p159 = por %p157, %p158
    %p160 = scmp.ne.s32.totalorder %s152, %s154
    %p161 = scmp.eq.s32.totalorder %s18, 1
    %p162 = por %p160, %p161
    %p163 = scmp.ne.s32.totalorder %s154, %s155
    %p164 = scmp.eq.s32.totalorder %s18, 0
    %p165 = por %p163, %p164
    %p166 = scmp.ne.s32.totalorder %s154, %s155
    %p167 = scmp.eq.s32.totalorder %s19, 1
    %p168 = por %p166, %p167
    %p170 = scmp.ne.s32.totalorder %s155, %s169
    %p171 = scmp.eq.s32.totalorder %s19, 0
    %p172 = por %p170, %p171
    %s173 = ssub.s32 %s13, %s20
    %p174 = scmp.eq.s32.totalorder %s173, 0
    %s176 = sadd.s32 %s175, 1
    %s177 = scalar_select %p174, %s175, %s176
    %p180 = pneg %p174
    %p181 = scmp.eq.s32.totalorder %s13, 1
    %p182 = por %p180, %p181
    %p183 = scmp.ne.s32.totalorder %s175, %s178
    %p184 = scmp.eq.s32.totalorder %s13, 0
    %p185 = por %p183, %p184
    %p186 = scmp.ne.s32.totalorder %s175, %s178
    %p187 = scmp.eq.s32.totalorder %s18, 1
    %p188 = por %p186, %p187
    %p189 = scmp.ne.s32.totalorder %s178, %s179
    %p190 = scmp.eq.s32.totalorder %s18, 0
    %p191 = por %p189, %p190
    %p192 = scmp.ne.s32.totalorder %s178, %s179
    %p193 = scmp.eq.s32.totalorder %s19, 1
    %p194 = por %p192, %p193
    %p196 = scmp.ne.s32.totalorder %s179, %s195
    %p197 = scmp.eq.s32.totalorder %s19, 0
    %p198 = por %p196, %p197
    %p199 = scmp.le.s32.totalorder 1, %s13
    %p200 = scmp.lt.s32.totalorder %s13, 3
    %p201 = pnand %p199, %p200
    %p202 = pneg %p201
    // Predicated region
    $region9: #{encoder_forward.1} parent=5 // pred_check
      _
    $region10: #{encoder_forward.1} parent=5 // pred_check_branch
      %204 = sbr.rel (%p201) target = $region12
    $region11: #{encoder_forward.1} parent=5 // pred_region
      %s205 = ssub.s32 %s13, 1
      // Predicated region
      $region13: #{encoder_forward.1} parent=11 // pred_check
        %p206 = pneg %p60
      $region14: #{encoder_forward.1} parent=11 // pred_check_branch
        %208 = sbr.rel (%p206) target = $region16
      $region15: #{encoder_forward.1} parent=11 // pred_region
        _
      $region16: #{encoder_forward.1} parent=11 // pred_fallthru
        _
      // Predicated region
      $region17: #{encoder_forward.1} parent=11 // pred_check
        %p209 = pneg %p81
      $region18: #{encoder_forward.1} parent=11 // pred_check_branch
        %211 = sbr.rel (%p209) target = $region20
      $region19: #{encoder_forward.1} parent=11 // pred_region
        _
      $region20: #{encoder_forward.1} parent=11 // pred_fallthru
        _
      // Predicated region
      $region21: #{encoder_forward.1} parent=11 // pred_check
        %p212 = pneg %p102
      $region22: #{encoder_forward.1} parent=11 // pred_check_branch
        %214 = sbr.rel (%p212) target = $region24
      $region23: #{encoder_forward.1} parent=11 // pred_region
        _
      $region24: #{encoder_forward.1} parent=11 // pred_fallthru
        _
      // Predicated region
      $region25: #{encoder_forward.1} parent=11 // pred_check
        %p215 = pneg %p123
      $region26: #{encoder_forward.1} parent=11 // pred_check_branch
        %217 = sbr.rel (%p215) target = $region28
      $region27: #{encoder_forward.1} parent=11 // pred_region
        _
      $region28: #{encoder_forward.1} parent=11 // pred_fallthru
        _
      // Predicated region
      $region29: #{encoder_forward.1} parent=11 // pred_check
        %p218 = pneg %p144
      $region30: #{encoder_forward.1} parent=11 // pred_check_branch
        %220 = sbr.rel (%p218) target = $region32
      $region31: #{encoder_forward.1} parent=11 // pred_region
        _
      $region32: #{encoder_forward.1} parent=11 // pred_fallthru
        _
      // Predicated region
      $region33: #{encoder_forward.1} parent=11 // pred_check
        %p221 = pneg %p165
      $region34: #{encoder_forward.1} parent=11 // pred_check_branch
        %223 = sbr.rel (%p221) target = $region36
      $region35: #{encoder_forward.1} parent=11 // pred_region
        _
      $region36: #{encoder_forward.1} parent=11 // pred_fallthru
        _
    $region12: #{encoder_forward.1} parent=5 // pred_fallthru
      _
    %p224 = scmp.lt.s32.totalorder %s13, 2
    // Predicated region
    $region37: #{encoder_forward.1} parent=5 // pred_check
      %p225 = pneg %p224
    $region38: #{encoder_forward.1} parent=5 // pred_check_branch
      %227 = sbr.rel (%p225) target = $region40
    $region39: #{encoder_forward.1} parent=5 // pred_region
      // Predicated region
      $region41: #{encoder_forward.1} parent=39 // pred_check
        %p228 = pneg %p33
      $region42: #{encoder_forward.1} parent=39 // pred_check_branch
        %230 = sbr.rel (%p228) target = $region44
      $region43: #{encoder_forward.1} parent=39 // pred_region
        %p231 = scmp.lt.s32.totalorder %s13, 1
        %s232 = scalar_select %p231, %s13, 1
        %s233 = smul.addr %s232, 2
        %s234 = smul.addr %s233, 8
        %s235 = scalar_lea.vmem %s0, %s234
      $region44: #{encoder_forward.1} parent=39 // pred_fallthru
        _
    $region40: #{encoder_forward.1} parent=5 // pred_fallthru
      _
    %p236 = scmp.le.s32.totalorder 1, %s13
    %p237 = scmp.lt.s32.totalorder %s13, 3
    %p238 = pnand %p236, %p237
    %p239 = pneg %p238
    // Predicated region
    $region45: #{encoder_forward.1} parent=5 // pred_check
      _
    $region46: #{encoder_forward.1} parent=5 // pred_check_branch
      %241 = sbr.rel (%p238) target = $region48
    $region47: #{encoder_forward.1} parent=5 // pred_region
      %s242 = ssub.s32 %s13, 1
      %p243 = scmp.lt.s32.totalorder %s18, 1
      %s244 = scalar_select %p243, %s18, 1
      %s245 = smul.addr %s244, 2
      %s246 = smul.addr %s245, 8
      %s247 = scalar_lea.vmem %s0, %s246
      %p248 = pneg %p39
      %p249 = pneg %p36
      %p250 = pneg %p60
      %p251 = pneg %p57
      %p252 = pneg %p81
      %p253 = pneg %p78
      %p254 = pneg %p102
      %p255 = pneg %p99
      %p256 = pneg %p123
      %p257 = pneg %p120
      %p258 = pneg %p144
      %p259 = pneg %p141
      %p260 = pneg %p165
      %p261 = pneg %p162
      %p262 = pneg %p191
      %p263 = pneg %p188
      %p264 = scmp.lt.s32.totalorder %s18, 1
      %s265 = scalar_select %p264, %s18, 1
      %s266 = smul.addr %s265, 4
      %s267 = smul.addr %s266, 8
      %s268 = scalar_lea.vmem %s7, %s267
      %p269 = scmp.lt.s32.totalorder %s18, 1
      %s270 = scalar_select %p269, %s18, 1
      %s271 = smul.addr %s270, 2
      %s272 = smul.addr %s271, 8
      %s273 = scalar_lea.vmem %s0, %s272
      %p274 = scmp.lt.s32.totalorder %s18, 1
      %s275 = scalar_select %p274, %s18, 1
      %s276 = smul.addr %s275, 4
      %s277 = smul.addr %s276, 8
      %s278 = scalar_lea.vmem %s7, %s277
      %v279 = vld [vmem:[%s273] sm:$0xff]
      %v280 = vld [vmem:[%s273 + $0x8] sm:$0xff]
      %v281 = vld [vmem:[%s2] sm:$0xff]
      %v282 = vld [vmem:[%s2 + $0x8] sm:$0xff]
      %vm283 = vcmask 130048
      %v285 = vsel %vm283, %v279, 0
      %v288 = vsel %vm283, %v280, 0
      %290 = vmatpush.msra.mxu0 0.0
      %291 = vmatpush.msra.mxu0 0.0
      %292 = vmatpush.msra.mxu0 0.0
      %293 = vmatpush.msra.mxu0 0.0
      %294 = vmatpush.msra.mxu0 0.0
      %295 = vmatpush.msra.mxu0 0.0
      %296 = vmatpush.msra.mxu0 0.0
      %297 = vmatpush.msra.mxu0 0.0
      %298 = vmatpush.msra.mxu0 0.0
      %299 = vmatpush.msra.mxu0 0.0
      %300 = vmatpush.msra.mxu0 0.0
      %301 = vmatpush.msra.mxu0 0.0
      %302 = vmatpush.msra.mxu0 0.0
      %303 = vmatpush.msra.mxu0 0.0
      %304 = vmatpush.msra.mxu0 %v282
      %305 = vmatpush.msra.mxu0 %v281
      %306 = vmatmul.f32.gmra.mxu0 %v285
      %v307 = vpop.f32.mrf.mxu0
      %v308 = vadd.f32 0.0, %v307
      %309 = vmatmul.f32.gmra.mxu0 %v288
      %v310 = vpop.f32.mrf.mxu0
      %v311 = vadd.f32 0.0, %v310
      %312 = vdwg.mxu0
      %v313 = vld [vmem:[%s1] sm:$0xff]
      %v314 = vld [vmem:[%s1 + $0x8] sm:$0xff]
      %v315 = vld [vmem:[%s1 + $0x10] sm:$0xff]
      %v316 = vld [vmem:[%s1 + $0x18] sm:$0xff]
      %v317 = vld [vmem:[%s1 + $0x20] sm:$0xff]
      %v318 = vld [vmem:[%s1 + $0x28] sm:$0xff]
      %v319 = vld [vmem:[%s1 + $0x30] sm:$0xff]
      %v320 = vld [vmem:[%s1 + $0x38] sm:$0xff]
      %v321 = vld [vmem:[%s1 + $0x40] sm:$0xff]
      %v322 = vld [vmem:[%s1 + $0x48] sm:$0xff]
      %v323 = vld [vmem:[%s1 + $0x50] sm:$0xff]
      %v324 = vld [vmem:[%s1 + $0x58] sm:$0xff]
      %v325 = vld [vmem:[%s1 + $0x60] sm:$0xff]
      %v326 = vld [vmem:[%s1 + $0x68] sm:$0xff]
      %v327 = vld [vmem:[%s1 + $0x70] sm:$0xff]
      %v328 = vld [vmem:[%s1 + $0x78] sm:$0xff]
      %s329 = scalar_lea.vmem %s2, 16
      %v330 = vld [vmem:[%s329] sm:$0xff]
      %v331 = vld [vmem:[%s329 + $0x8] sm:$0xff]
      %332 = vmatpush.msra.mxu0 0.0
      %333 = vmatpush.msra.mxu0 0.0
      %334 = vmatpush.msra.mxu0 0.0
      %335 = vmatpush.msra.mxu0 0.0
      %336 = vmatpush.msra.mxu0 0.0
      %337 = vmatpush.msra.mxu0 0.0
      %338 = vmatpush.msra.mxu0 0.0
      %339 = vmatpush.msra.mxu0 0.0
      %340 = vmatpush.msra.mxu0 0.0
      %341 = vmatpush.msra.mxu0 0.0
      %342 = vmatpush.msra.mxu0 0.0
      %343 = vmatpush.msra.mxu0 0.0
      %344 = vmatpush.msra.mxu0 0.0
      %345 = vmatpush.msra.mxu0 0.0
      %346 = vmatpush.msra.mxu0 %v331
      %347 = vmatpush.msra.mxu0 %v330
      %348 = vmatmul.f32.gmra.mxu0 %v285
      %v349 = vpop.f32.mrf.mxu0
      %v350 = vadd.f32 0.0, %v349
      %351 = vmatmul.f32.gmra.mxu0 %v288
      %v352 = vpop.f32.mrf.mxu0
      %v353 = vadd.f32 0.0, %v352
      %354 = vdwg.mxu0
      %s355 = scalar_lea.vmem %s1, 128
      %v356 = vld [vmem:[%s355] sm:$0xff]
      %v357 = vld [vmem:[%s355 + $0x8] sm:$0xff]
      %v358 = vld [vmem:[%s355 + $0x10] sm:$0xff]
      %v359 = vld [vmem:[%s355 + $0x18] sm:$0xff]
      %v360 = vld [vmem:[%s355 + $0x20] sm:$0xff]
      %v361 = vld [vmem:[%s355 + $0x28] sm:$0xff]
      %v362 = vld [vmem:[%s355 + $0x30] sm:$0xff]
      %v363 = vld [vmem:[%s355 + $0x38] sm:$0xff]
      %v364 = vld [vmem:[%s355 + $0x40] sm:$0xff]
      %v365 = vld [vmem:[%s355 + $0x48] sm:$0xff]
      %v366 = vld [vmem:[%s355 + $0x50] sm:$0xff]
      %v367 = vld [vmem:[%s355 + $0x58] sm:$0xff]
      %v368 = vld [vmem:[%s355 + $0x60] sm:$0xff]
      %v369 = vld [vmem:[%s355 + $0x68] sm:$0xff]
      %v370 = vld [vmem:[%s355 + $0x70] sm:$0xff]
      %v371 = vld [vmem:[%s355 + $0x78] sm:$0xff]
      %v373 = vsel %vm283, %v356, 0
      %v376 = vsel %vm283, %v357, 0
      %v379 = vsel %vm283, %v358, 0
      %v382 = vsel %vm283, %v359, 0
      %v385 = vsel %vm283, %v360, 0
      %v388 = vsel %vm283, %v361, 0
      %v391 = vsel %vm283, %v362, 0
      %v394 = vsel %vm283, %v363, 0
      %v397 = vsel %vm283, %v364, 0
      %v400 = vsel %vm283, %v365, 0
      %v403 = vsel %vm283, %v366, 0
      %v406 = vsel %vm283, %v367, 0
      %v409 = vsel %vm283, %v368, 0
      %v412 = vsel %vm283, %v369, 0
      %v415 = vsel %vm283, %v370, 0
      %v418 = vsel %vm283, %v371, 0
      %420 = vmatpush.msra.mxu0 0.0
      %421 = vmatpush.msra.mxu0 0.0
      %422 = vmatpush.msra.mxu0 0.0
      %423 = vmatpush.msra.mxu0 0.0
      %424 = vmatpush.msra.mxu0 0.0
      %425 = vmatpush.msra.mxu0 0.0
      %426 = vmatpush.msra.mxu0 0.0
      %427 = vmatpush.msra.mxu0 0.0
      %428 = vmatpush.msra.mxu0 0.0
      %429 = vmatpush.msra.mxu0 0.0
      %430 = vmatpush.msra.mxu0 0.0
      %431 = vmatpush.msra.mxu0 0.0
      %432 = vmatpush.msra.mxu0 0.0
      %433 = vmatpush.msra.mxu0 0.0
      %434 = vmatpush.msra.mxu0 %v353
      %435 = vmatpush.msra.mxu0 %v350
      %436 = vmatmul.f32.gmra.mxu0 %v373
      %v437 = vpop.f32.mrf.mxu0
      %v438 = vadd.f32 0.0, %v437
      %439 = vmatmul.f32.gmra.mxu0 %v376
      %v440 = vpop.f32.mrf.mxu0
      %v441 = vadd.f32 0.0, %v440
      %442 = vmatmul.f32.gmra.mxu0 %v379
      %v443 = vpop.f32.mrf.mxu0
      %v444 = vadd.f32 0.0, %v443
      %445 = vmatmul.f32.gmra.mxu0 %v382
      %v446 = vpop.f32.mrf.mxu0
      %v447 = vadd.f32 0.0, %v446
      %448 = vmatmul.f32.gmra.mxu0 %v385
      %v449 = vpop.f32.mrf.mxu0
      %v450 = vadd.f32 0.0, %v449
      %451 = vmatmul.f32.gmra.mxu0 %v388
      %v452 = vpop.f32.mrf.mxu0
      %v453 = vadd.f32 0.0, %v452
      %454 = vmatmul.f32.gmra.mxu0 %v391
      %v455 = vpop.f32.mrf.mxu0
      %v456 = vadd.f32 0.0, %v455
      %457 = vmatmul.f32.gmra.mxu0 %v394
      %v458 = vpop.f32.mrf.mxu0
      %v459 = vadd.f32 0.0, %v458
      %460 = vmatmul.f32.gmra.mxu0 %v397
      %v461 = vpop.f32.mrf.mxu0
      %v462 = vadd.f32 0.0, %v461
      %463 = vmatmul.f32.gmra.mxu0 %v400
      %v464 = vpop.f32.mrf.mxu0
      %v465 = vadd.f32 0.0, %v464
      %466 = vmatmul.f32.gmra.mxu0 %v403
      %v467 = vpop.f32.mrf.mxu0
      %v468 = vadd.f32 0.0, %v467
      %469 = vmatmul.f32.gmra.mxu0 %v406
      %v470 = vpop.f32.mrf.mxu0
      %v471 = vadd.f32 0.0, %v470
      %472 = vmatmul.f32.gmra.mxu0 %v409
      %v473 = vpop.f32.mrf.mxu0
      %v474 = vadd.f32 0.0, %v473
      %475 = vmatmul.f32.gmra.mxu0 %v412
      %v476 = vpop.f32.mrf.mxu0
      %v477 = vadd.f32 0.0, %v476
      %478 = vmatmul.f32.gmra.mxu0 %v415
      %v479 = vpop.f32.mrf.mxu0
      %v480 = vadd.f32 0.0, %v479
      %481 = vmatmul.f32.gmra.mxu0 %v418
      %v482 = vpop.f32.mrf.mxu0
      %v483 = vadd.f32 0.0, %v482
      %484 = vdwg.mxu0
      %v486 = vsel %vm283, %v313, 0
      %v489 = vsel %vm283, %v314, 0
      %v492 = vsel %vm283, %v315, 0
      %v495 = vsel %vm283, %v316, 0
      %v498 = vsel %vm283, %v317, 0
      %v501 = vsel %vm283, %v318, 0
      %v504 = vsel %vm283, %v319, 0
      %v507 = vsel %vm283, %v320, 0
      %v510 = vsel %vm283, %v321, 0
      %v513 = vsel %vm283, %v322, 0
      %v516 = vsel %vm283, %v323, 0
      %v519 = vsel %vm283, %v324, 0
      %v522 = vsel %vm283, %v325, 0
      %v525 = vsel %vm283, %v326, 0
      %v528 = vsel %vm283, %v327, 0
      %v531 = vsel %vm283, %v328, 0
      %533 = vmatpush.msra.mxu0 0.0
      %534 = vmatpush.msra.mxu0 0.0
      %535 = vmatpush.msra.mxu0 0.0
      %536 = vmatpush.msra.mxu0 0.0
      %537 = vmatpush.msra.mxu0 0.0
      %538 = vmatpush.msra.mxu0 0.0
      %539 = vmatpush.msra.mxu0 0.0
      %540 = vmatpush.msra.mxu0 0.0
      %541 = vmatpush.msra.mxu0 0.0
      %542 = vmatpush.msra.mxu0 0.0
      %543 = vmatpush.msra.mxu0 0.0
      %544 = vmatpush.msra.mxu0 0.0
      %545 = vmatpush.msra.mxu0 0.0
      %546 = vmatpush.msra.mxu0 0.0
      %547 = vmatpush.msra.mxu0 %v311
      %548 = vmatpush.msra.mxu0 %v308
      %549 = vmatmul.f32.gmra.mxu0 %v486
      %v550 = vpop.f32.mrf.mxu0
      %v551 = vadd.f32 %v438, %v550
      %552 = vmatmul.f32.gmra.mxu0 %v489
      %v553 = vpop.f32.mrf.mxu0
      %v554 = vadd.f32 %v441, %v553
      %555 = vmatmul.f32.gmra.mxu0 %v492
      %v556 = vpop.f32.mrf.mxu0
      %v557 = vadd.f32 %v444, %v556
      %558 = vmatmul.f32.gmra.mxu0 %v495
      %v559 = vpop.f32.mrf.mxu0
      %v560 = vadd.f32 %v447, %v559
      %561 = vmatmul.f32.gmra.mxu0 %v498
      %v562 = vpop.f32.mrf.mxu0
      %v563 = vadd.f32 %v450, %v562
      %564 = vmatmul.f32.gmra.mxu0 %v501
      %v565 = vpop.f32.mrf.mxu0
      %v566 = vadd.f32 %v453, %v565
      %567 = vmatmul.f32.gmra.mxu0 %v504
      %v568 = vpop.f32.mrf.mxu0
      %v569 = vadd.f32 %v456, %v568
      %570 = vmatmul.f32.gmra.mxu0 %v507
      %v571 = vpop.f32.mrf.mxu0
      %v572 = vadd.f32 %v459, %v571
      %573 = vmatmul.f32.gmra.mxu0 %v510
      %v574 = vpop.f32.mrf.mxu0
      %v575 = vadd.f32 %v462, %v574
      %576 = vmatmul.f32.gmra.mxu0 %v513
      %v577 = vpop.f32.mrf.mxu0
      %v578 = vadd.f32 %v465, %v577
      %579 = vmatmul.f32.gmra.mxu0 %v516
      %v580 = vpop.f32.mrf.mxu0
      %v581 = vadd.f32 %v468, %v580
      %582 = vmatmul.f32.gmra.mxu0 %v519
      %v583 = vpop.f32.mrf.mxu0
      %v584 = vadd.f32 %v471, %v583
      %585 = vmatmul.f32.gmra.mxu0 %v522
      %v586 = vpop.f32.mrf.mxu0
      %v587 = vadd.f32 %v474, %v586
      %588 = vmatmul.f32.gmra.mxu0 %v525
      %v589 = vpop.f32.mrf.mxu0
      %v590 = vadd.f32 %v477, %v589
      %591 = vmatmul.f32.gmra.mxu0 %v528
      %v592 = vpop.f32.mrf.mxu0
      %v593 = vadd.f32 %v480, %v592
      %594 = vmatmul.f32.gmra.mxu0 %v531
      %v595 = vpop.f32.mrf.mxu0
      %v596 = vadd.f32 %v483, %v595
      %597 = vdwg.mxu0
      %s598 = scalar_lea.vmem %s2, 32
      %v599 = vld [vmem:[%s598] sm:$0xff]
      %v600 = vld [vmem:[%s598 + $0x8] sm:$0xff]
      %601 = vmatpush.msra.mxu0 0.0
      %602 = vmatpush.msra.mxu0 0.0
      %603 = vmatpush.msra.mxu0 0.0
      %604 = vmatpush.msra.mxu0 0.0
      %605 = vmatpush.msra.mxu0 0.0
      %606 = vmatpush.msra.mxu0 0.0
      %607 = vmatpush.msra.mxu0 0.0
      %608 = vmatpush.msra.mxu0 0.0
      %609 = vmatpush.msra.mxu0 0.0
      %610 = vmatpush.msra.mxu0 0.0
      %611 = vmatpush.msra.mxu0 0.0
      %612 = vmatpush.msra.mxu0 0.0
      %613 = vmatpush.msra.mxu0 0.0
      %614 = vmatpush.msra.mxu0 0.0
      %615 = vmatpush.msra.mxu0 %v600
      %616 = vmatpush.msra.mxu0 %v599
      %617 = vmatmul.f32.gmra.mxu0 %v285
      %v618 = vpop.f32.mrf.mxu0
      %v619 = vadd.f32 0.0, %v618
      %620 = vmatmul.f32.gmra.mxu0 %v288
      %v621 = vpop.f32.mrf.mxu0
      %v622 = vadd.f32 0.0, %v621
      %623 = vdwg.mxu0
      %s624 = scalar_lea.vmem %s1, 256
      %v625 = vld [vmem:[%s624] sm:$0xff]
      %v626 = vld [vmem:[%s624 + $0x8] sm:$0xff]
      %v627 = vld [vmem:[%s624 + $0x10] sm:$0xff]
      %v628 = vld [vmem:[%s624 + $0x18] sm:$0xff]
      %v629 = vld [vmem:[%s624 + $0x20] sm:$0xff]
      %v630 = vld [vmem:[%s624 + $0x28] sm:$0xff]
      %v631 = vld [vmem:[%s624 + $0x30] sm:$0xff]
      %v632 = vld [vmem:[%s624 + $0x38] sm:$0xff]
      %v633 = vld [vmem:[%s624 + $0x40] sm:$0xff]
      %v634 = vld [vmem:[%s624 + $0x48] sm:$0xff]
      %v635 = vld [vmem:[%s624 + $0x50] sm:$0xff]
      %v636 = vld [vmem:[%s624 + $0x58] sm:$0xff]
      %v637 = vld [vmem:[%s624 + $0x60] sm:$0xff]
      %v638 = vld [vmem:[%s624 + $0x68] sm:$0xff]
      %v639 = vld [vmem:[%s624 + $0x70] sm:$0xff]
      %v640 = vld [vmem:[%s624 + $0x78] sm:$0xff]
      %v642 = vsel %vm283, %v625, 0
      %v645 = vsel %vm283, %v626, 0
      %v648 = vsel %vm283, %v627, 0
      %v651 = vsel %vm283, %v628, 0
      %v654 = vsel %vm283, %v629, 0
      %v657 = vsel %vm283, %v630, 0
      %v660 = vsel %vm283, %v631, 0
      %v663 = vsel %vm283, %v632, 0
      %v666 = vsel %vm283, %v633, 0
      %v669 = vsel %vm283, %v634, 0
      %v672 = vsel %vm283, %v635, 0
      %v675 = vsel %vm283, %v636, 0
      %v678 = vsel %vm283, %v637, 0
      %v681 = vsel %vm283, %v638, 0
      %v684 = vsel %vm283, %v639, 0
      %v687 = vsel %vm283, %v640, 0
      %689 = vmatpush.msra.mxu0 0.0
      %690 = vmatpush.msra.mxu0 0.0
      %691 = vmatpush.msra.mxu0 0.0
      %692 = vmatpush.msra.mxu0 0.0
      %693 = vmatpush.msra.mxu0 0.0
      %694 = vmatpush.msra.mxu0 0.0
      %695 = vmatpush.msra.mxu0 0.0
      %696 = vmatpush.msra.mxu0 0.0
      %697 = vmatpush.msra.mxu0 0.0
      %698 = vmatpush.msra.mxu0 0.0
      %699 = vmatpush.msra.mxu0 0.0
      %700 = vmatpush.msra.mxu0 0.0
      %701 = vmatpush.msra.mxu0 0.0
      %702 = vmatpush.msra.mxu0 0.0
      %703 = vmatpush.msra.mxu0 %v622
      %704 = vmatpush.msra.mxu0 %v619
      %705 = vmatmul.f32.gmra.mxu0 %v642
      %v706 = vpop.f32.mrf.mxu0
      %v707 = vadd.f32 0.0, %v706
      %708 = vmatmul.f32.gmra.mxu0 %v645
      %v709 = vpop.f32.mrf.mxu0
      %v710 = vadd.f32 0.0, %v709
      %711 = vmatmul.f32.gmra.mxu0 %v648
      %v712 = vpop.f32.mrf.mxu0
      %v713 = vadd.f32 0.0, %v712
      %714 = vmatmul.f32.gmra.mxu0 %v651
      %v715 = vpop.f32.mrf.mxu0
      %v716 = vadd.f32 0.0, %v715
      %717 = vmatmul.f32.gmra.mxu0 %v654
      %v718 = vpop.f32.mrf.mxu0
      %v719 = vadd.f32 0.0, %v718
      %720 = vmatmul.f32.gmra.mxu0 %v657
      %v721 = vpop.f32.mrf.mxu0
      %v722 = vadd.f32 0.0, %v721
      %723 = vmatmul.f32.gmra.mxu0 %v660
      %v724 = vpop.f32.mrf.mxu0
      %v725 = vadd.f32 0.0, %v724
      %726 = vmatmul.f32.gmra.mxu0 %v663
      %v727 = vpop.f32.mrf.mxu0
      %v728 = vadd.f32 0.0, %v727
      %729 = vmatmul.f32.gmra.mxu0 %v666
      %v730 = vpop.f32.mrf.mxu0
      %v731 = vadd.f32 0.0, %v730
      %732 = vmatmul.f32.gmra.mxu0 %v669
      %v733 = vpop.f32.mrf.mxu0
      %v734 = vadd.f32 0.0, %v733
      %735 = vmatmul.f32.gmra.mxu0 %v672
      %v736 = vpop.f32.mrf.mxu0
      %v737 = vadd.f32 0.0, %v736
      %738 = vmatmul.f32.gmra.mxu0 %v675
      %v739 = vpop.f32.mrf.mxu0
      %v740 = vadd.f32 0.0, %v739
      %741 = vmatmul.f32.gmra.mxu0 %v678
      %v742 = vpop.f32.mrf.mxu0
      %v743 = vadd.f32 0.0, %v742
      %744 = vmatmul.f32.gmra.mxu0 %v681
      %v745 = vpop.f32.mrf.mxu0
      %v746 = vadd.f32 0.0, %v745
      %747 = vmatmul.f32.gmra.mxu0 %v684
      %v748 = vpop.f32.mrf.mxu0
      %v749 = vadd.f32 0.0, %v748
      %750 = vmatmul.f32.gmra.mxu0 %v687
      %v751 = vpop.f32.mrf.mxu0
      %v752 = vadd.f32 0.0, %v751
      %753 = vdwg.mxu0
      %v754 = vadd.f32 %v551, %v707
      %v755 = vadd.f32 %v554, %v710
      %v756 = vadd.f32 %v557, %v713
      %v757 = vadd.f32 %v560, %v716
      %v758 = vadd.f32 %v563, %v719
      %v759 = vadd.f32 %v566, %v722
      %v760 = vadd.f32 %v569, %v725
      %v761 = vadd.f32 %v572, %v728
      %v762 = vadd.f32 %v575, %v731
      %v763 = vadd.f32 %v578, %v734
      %v764 = vadd.f32 %v581, %v737
      %v765 = vadd.f32 %v584, %v740
      %v766 = vadd.f32 %v587, %v743
      %v767 = vadd.f32 %v590, %v746
      %v768 = vadd.f32 %v593, %v749
      %v769 = vadd.f32 %v596, %v752
      %v770 = vld [vmem:[%s3] sm:$0xff]
      %v771 = vld [vmem:[%s3 + $0x8] sm:$0xff]
      %v772 = vld [vmem:[%s3 + $0x10] sm:$0xff]
      %v773 = vld [vmem:[%s3 + $0x18] sm:$0xff]
      %v774 = vld [vmem:[%s3 + $0x20] sm:$0xff]
      %v775 = vld [vmem:[%s3 + $0x28] sm:$0xff]
      %v776 = vld [vmem:[%s3 + $0x30] sm:$0xff]
      %v777 = vld [vmem:[%s3 + $0x38] sm:$0xff]
      %v778 = vld [vmem:[%s3 + $0x40] sm:$0xff]
      %v779 = vld [vmem:[%s3 + $0x48] sm:$0xff]
      %v780 = vld [vmem:[%s3 + $0x50] sm:$0xff]
      %v781 = vld [vmem:[%s3 + $0x58] sm:$0xff]
      %v782 = vld [vmem:[%s3 + $0x60] sm:$0xff]
      %v783 = vld [vmem:[%s3 + $0x68] sm:$0xff]
      %v784 = vld [vmem:[%s3 + $0x70] sm:$0xff]
      %v785 = vld [vmem:[%s3 + $0x78] sm:$0xff]
      %787 = vset.pattern.permute.xlu0 0
      %788 = vperm.xlu0 %787, %v770
      %v789 = vpop.permute.xlu0 %788
      %792 = vset.pattern.permute.xlu0 0
      %793 = vperm.xlu0 %792, %v771
      %v794 = vpop.permute.xlu0 %793
      %797 = vset.pattern.permute.xlu0 0
      %798 = vperm.xlu0 %797, %v772
      %v799 = vpop.permute.xlu0 %798
      %802 = vset.pattern.permute.xlu0 0
      %803 = vperm.xlu0 %802, %v773
      %v804 = vpop.permute.xlu0 %803
      %807 = vset.pattern.permute.xlu0 0
      %808 = vperm.xlu0 %807, %v774
      %v809 = vpop.permute.xlu0 %808
      %812 = vset.pattern.permute.xlu0 0
      %813 = vperm.xlu0 %812, %v775
      %v814 = vpop.permute.xlu0 %813
      %817 = vset.pattern.permute.xlu0 0
      %818 = vperm.xlu0 %817, %v776
      %v819 = vpop.permute.xlu0 %818
      %822 = vset.pattern.permute.xlu0 0
      %823 = vperm.xlu0 %822, %v777
      %v824 = vpop.permute.xlu0 %823
      %827 = vset.pattern.permute.xlu0 0
      %828 = vperm.xlu0 %827, %v778
      %v829 = vpop.permute.xlu0 %828
      %832 = vset.pattern.permute.xlu0 0
      %833 = vperm.xlu0 %832, %v779
      %v834 = vpop.permute.xlu0 %833
      %837 = vset.pattern.permute.xlu0 0
      %838 = vperm.xlu0 %837, %v780
      %v839 = vpop.permute.xlu0 %838
      %842 = vset.pattern.permute.xlu0 0
      %843 = vperm.xlu0 %842, %v781
      %v844 = vpop.permute.xlu0 %843
      %847 = vset.pattern.permute.xlu0 0
      %848 = vperm.xlu0 %847, %v782
      %v849 = vpop.permute.xlu0 %848
      %852 = vset.pattern.permute.xlu0 0
      %853 = vperm.xlu0 %852, %v783
      %v854 = vpop.permute.xlu0 %853
      %857 = vset.pattern.permute.xlu0 0
      %858 = vperm.xlu0 %857, %v784
      %v859 = vpop.permute.xlu0 %858
      %862 = vset.pattern.permute.xlu0 0
      %863 = vperm.xlu0 %862, %v785
      %v864 = vpop.permute.xlu0 %863
      %v866 = vadd.f32 %v754, %v789
      %v867 = vadd.f32 %v755, %v794
      %v868 = vadd.f32 %v756, %v799
      %v869 = vadd.f32 %v757, %v804
      %v870 = vadd.f32 %v758, %v809
      %v871 = vadd.f32 %v759, %v814
      %v872 = vadd.f32 %v760, %v819
      %v873 = vadd.f32 %v761, %v824
      %v874 = vadd.f32 %v762, %v829
      %v875 = vadd.f32 %v763, %v834
      %v876 = vadd.f32 %v764, %v839
      %v877 = vadd.f32 %v765, %v844
      %v878 = vadd.f32 %v766, %v849
      %v879 = vadd.f32 %v767, %v854
      %v880 = vadd.f32 %v768, %v859
      %v881 = vadd.f32 %v769, %v864
      %v882 = vmax.f32 %v866, 0.0
      %v883 = vmax.f32 %v867, 0.0
      %v884 = vmax.f32 %v868, 0.0
      %v885 = vmax.f32 %v869, 0.0
      %v886 = vmax.f32 %v870, 0.0
      %v887 = vmax.f32 %v871, 0.0
      %v888 = vmax.f32 %v872, 0.0
      %v889 = vmax.f32 %v873, 0.0
      %v890 = vmax.f32 %v874, 0.0
      %v891 = vmax.f32 %v875, 0.0
      %v892 = vmax.f32 %v876, 0.0
      %v893 = vmax.f32 %v877, 0.0
      %v894 = vmax.f32 %v878, 0.0
      %v895 = vmax.f32 %v879, 0.0
      %v896 = vmax.f32 %v880, 0.0
      %v897 = vmax.f32 %v881, 0.0
      %v898 = vld [vmem:[%s5] sm:$0xff]
      %vm899 = vcmask 64512
      %v901 = vsel %vm899, %v882, 0
      %v904 = vsel %vm899, %v883, 0
      %v907 = vsel %vm899, %v884, 0
      %v910 = vsel %vm899, %v885, 0
      %v913 = vsel %vm899, %v886, 0
      %v916 = vsel %vm899, %v887, 0
      %v919 = vsel %vm899, %v888, 0
      %v922 = vsel %vm899, %v889, 0
      %v925 = vsel %vm899, %v890, 0
      %v928 = vsel %vm899, %v891, 0
      %v931 = vsel %vm899, %v892, 0
      %v934 = vsel %vm899, %v893, 0
      %v937 = vsel %vm899, %v894, 0
      %v940 = vsel %vm899, %v895, 0
      %v943 = vsel %vm899, %v896, 0
      %v946 = vsel %vm899, %v897, 0
      %948 = vmatpush.msra.mxu0 0.0
      %949 = vmatpush.msra.mxu0 0.0
      %950 = vmatpush.msra.mxu0 0.0
      %951 = vmatpush.msra.mxu0 0.0
      %952 = vmatpush.msra.mxu0 0.0
      %953 = vmatpush.msra.mxu0 0.0
      %954 = vmatpush.msra.mxu0 0.0
      %955 = vmatpush.msra.mxu0 0.0
      %956 = vmatpush.msra.mxu0 0.0
      %957 = vmatpush.msra.mxu0 0.0
      %958 = vmatpush.msra.mxu0 0.0
      %959 = vmatpush.msra.mxu0 0.0
      %960 = vmatpush.msra.mxu0 0.0
      %961 = vmatpush.msra.mxu0 0.0
      %962 = vmatpush.msra.mxu0 0.0
      %963 = vmatpush.msra.mxu0 %v898
      %964 = vmatmul.f32.gmra.mxu0 %v901
      %v965 = vpop.f32.mrf.mxu0
      %v966 = vadd.f32 0.0, %v965
      %967 = vmatmul.f32.gmra.mxu0 %v904
      %v968 = vpop.f32.mrf.mxu0
      %v969 = vadd.f32 0.0, %v968
      %970 = vmatmul.f32.gmra.mxu0 %v907
      %v971 = vpop.f32.mrf.mxu0
      %v972 = vadd.f32 0.0, %v971
      %973 = vmatmul.f32.gmra.mxu0 %v910
      %v974 = vpop.f32.mrf.mxu0
      %v975 = vadd.f32 0.0, %v974
      %976 = vmatmul.f32.gmra.mxu0 %v913
      %v977 = vpop.f32.mrf.mxu0
      %v978 = vadd.f32 0.0, %v977
      %979 = vmatmul.f32.gmra.mxu0 %v916
      %v980 = vpop.f32.mrf.mxu0
      %v981 = vadd.f32 0.0, %v980
      %982 = vmatmul.f32.gmra.mxu0 %v919
      %v983 = vpop.f32.mrf.mxu0
      %v984 = vadd.f32 0.0, %v983
      %985 = vmatmul.f32.gmra.mxu0 %v922
      %v986 = vpop.f32.mrf.mxu0
      %v987 = vadd.f32 0.0, %v986
      %988 = vmatmul.f32.gmra.mxu0 %v925
      %v989 = vpop.f32.mrf.mxu0
      %v990 = vadd.f32 0.0, %v989
      %991 = vmatmul.f32.gmra.mxu0 %v928
      %v992 = vpop.f32.mrf.mxu0
      %v993 = vadd.f32 0.0, %v992
      %994 = vmatmul.f32.gmra.mxu0 %v931
      %v995 = vpop.f32.mrf.mxu0
      %v996 = vadd.f32 0.0, %v995
      %997 = vmatmul.f32.gmra.mxu0 %v934
      %v998 = vpop.f32.mrf.mxu0
      %v999 = vadd.f32 0.0, %v998
      %1000 = vmatmul.f32.gmra.mxu0 %v937
      %v1001 = vpop.f32.mrf.mxu0
      %v1002 = vadd.f32 0.0, %v1001
      %1003 = vmatmul.f32.gmra.mxu0 %v940
      %v1004 = vpop.f32.mrf.mxu0
      %v1005 = vadd.f32 0.0, %v1004
      %1006 = vmatmul.f32.gmra.mxu0 %v943
      %v1007 = vpop.f32.mrf.mxu0
      %v1008 = vadd.f32 0.0, %v1007
      %1009 = vmatmul.f32.gmra.mxu0 %v946
      %v1010 = vpop.f32.mrf.mxu0
      %v1011 = vadd.f32 0.0, %v1010
      %1012 = vdwg.mxu0
      %v1013 = vld [vmem:[%s4] sm:$0xff]
      %v1014 = vld [vmem:[%s4 + $0x8] sm:$0xff]
      %v1015 = vld [vmem:[%s4 + $0x10] sm:$0xff]
      %v1016 = vld [vmem:[%s4 + $0x18] sm:$0xff]
      %s1017 = scalar_lea.vmem %s5, 8
      %v1018 = vld [vmem:[%s1017] sm:$0xff]
      %1019 = vmatpush.msra.mxu0 0.0
      %1020 = vmatpush.msra.mxu0 0.0
      %1021 = vmatpush.msra.mxu0 0.0
      %1022 = vmatpush.msra.mxu0 0.0
      %1023 = vmatpush.msra.mxu0 0.0
      %1024 = vmatpush.msra.mxu0 0.0
      %1025 = vmatpush.msra.mxu0 0.0
      %1026 = vmatpush.msra.mxu0 0.0
      %1027 = vmatpush.msra.mxu0 0.0
      %1028 = vmatpush.msra.mxu0 0.0
      %1029 = vmatpush.msra.mxu0 0.0
      %1030 = vmatpush.msra.mxu0 0.0
      %1031 = vmatpush.msra.mxu0 0.0
      %1032 = vmatpush.msra.mxu0 0.0
      %1033 = vmatpush.msra.mxu0 0.0
      %1034 = vmatpush.msra.mxu0 %v1018
      %1035 = vmatmul.f32.gmra.mxu0 %v901
      %v1036 = vpop.f32.mrf.mxu0
      %v1037 = vadd.f32 0.0, %v1036
      %1038 = vmatmul.f32.gmra.mxu0 %v904
      %v1039 = vpop.f32.mrf.mxu0
      %v1040 = vadd.f32 0.0, %v1039
      %1041 = vmatmul.f32.gmra.mxu0 %v907
      %v1042 = vpop.f32.mrf.mxu0
      %v1043 = vadd.f32 0.0, %v1042
      %1044 = vmatmul.f32.gmra.mxu0 %v910
      %v1045 = vpop.f32.mrf.mxu0
      %v1046 = vadd.f32 0.0, %v1045
      %1047 = vmatmul.f32.gmra.mxu0 %v913
      %v1048 = vpop.f32.mrf.mxu0
      %v1049 = vadd.f32 0.0, %v1048
      %1050 = vmatmul.f32.gmra.mxu0 %v916
      %v1051 = vpop.f32.mrf.mxu0
      %v1052 = vadd.f32 0.0, %v1051
      %1053 = vmatmul.f32.gmra.mxu0 %v919
      %v1054 = vpop.f32.mrf.mxu0
      %v1055 = vadd.f32 0.0, %v1054
      %1056 = vmatmul.f32.gmra.mxu0 %v922
      %v1057 = vpop.f32.mrf.mxu0
      %v1058 = vadd.f32 0.0, %v1057
      %1059 = vmatmul.f32.gmra.mxu0 %v925
      %v1060 = vpop.f32.mrf.mxu0
      %v1061 = vadd.f32 0.0, %v1060
      %1062 = vmatmul.f32.gmra.mxu0 %v928
      %v1063 = vpop.f32.mrf.mxu0
      %v1064 = vadd.f32 0.0, %v1063
      %1065 = vmatmul.f32.gmra.mxu0 %v931
      %v1066 = vpop.f32.mrf.mxu0
      %v1067 = vadd.f32 0.0, %v1066
      %1068 = vmatmul.f32.gmra.mxu0 %v934
      %v1069 = vpop.f32.mrf.mxu0
      %v1070 = vadd.f32 0.0, %v1069
      %1071 = vmatmul.f32.gmra.mxu0 %v937
      %v1072 = vpop.f32.mrf.mxu0
      %v1073 = vadd.f32 0.0, %v1072
      %1074 = vmatmul.f32.gmra.mxu0 %v940
      %v1075 = vpop.f32.mrf.mxu0
      %v1076 = vadd.f32 0.0, %v1075
      %1077 = vmatmul.f32.gmra.mxu0 %v943
      %v1078 = vpop.f32.mrf.mxu0
      %v1079 = vadd.f32 0.0, %v1078
      %1080 = vmatmul.f32.gmra.mxu0 %v946
      %v1081 = vpop.f32.mrf.mxu0
      %v1082 = vadd.f32 0.0, %v1081
      %1083 = vdwg.mxu0
      %s1084 = scalar_lea.vmem %s4, 32
      %v1085 = vld [vmem:[%s1084] sm:$0xff]
      %v1086 = vld [vmem:[%s1084 + $0x8] sm:$0xff]
      %v1087 = vld [vmem:[%s1084 + $0x10] sm:$0xff]
      %v1088 = vld [vmem:[%s1084 + $0x18] sm:$0xff]
      %1089 = vmatpush.msra.mxu0 %v1082
      %1090 = vmatpush.msra.mxu0 %v1079
      %1091 = vmatpush.msra.mxu0 %v1076
      %1092 = vmatpush.msra.mxu0 %v1073
      %1093 = vmatpush.msra.mxu0 %v1070
      %1094 = vmatpush.msra.mxu0 %v1067
      %1095 = vmatpush.msra.mxu0 %v1064
      %1096 = vmatpush.msra.mxu0 %v1061
      %1097 = vmatpush.msra.mxu0 %v1058
      %1098 = vmatpush.msra.mxu0 %v1055
      %1099 = vmatpush.msra.mxu0 %v1052
      %1100 = vmatpush.msra.mxu0 %v1049
      %1101 = vmatpush.msra.mxu0 %v1046
      %1102 = vmatpush.msra.mxu0 %v1043
      %1103 = vmatpush.msra.mxu0 %v1040
      %1104 = vmatpush.msra.mxu0 %v1037
      %1105 = vmatmul.f32.gmra.mxu0 %v1085
      %v1106 = vpop.f32.mrf.mxu0
      %v1107 = vadd.f32 0.0, %v1106
      %1108 = vmatmul.f32.gmra.mxu0 %v1086
      %v1109 = vpop.f32.mrf.mxu0
      %v1110 = vadd.f32 0.0, %v1109
      %1111 = vmatmul.f32.gmra.mxu0 %v1087
      %v1112 = vpop.f32.mrf.mxu0
      %v1113 = vadd.f32 0.0, %v1112
      %1114 = vmatmul.f32.gmra.mxu0 %v1088
      %v1115 = vpop.f32.mrf.mxu0
      %v1116 = vadd.f32 0.0, %v1115
      %1117 = vdwg.mxu0
      %1118 = vmatpush.msra.mxu0 %v1011
      %1119 = vmatpush.msra.mxu0 %v1008
      %1120 = vmatpush.msra.mxu0 %v1005
      %1121 = vmatpush.msra.mxu0 %v1002
      %1122 = vmatpush.msra.mxu0 %v999
      %1123 = vmatpush.msra.mxu0 %v996
      %1124 = vmatpush.msra.mxu0 %v993
      %1125 = vmatpush.msra.mxu0 %v990
      %1126 = vmatpush.msra.mxu0 %v987
      %1127 = vmatpush.msra.mxu0 %v984
      %1128 = vmatpush.msra.mxu0 %v981
      %1129 = vmatpush.msra.mxu0 %v978
      %1130 = vmatpush.msra.mxu0 %v975
      %1131 = vmatpush.msra.mxu0 %v972
      %1132 = vmatpush.msra.mxu0 %v969
      %1133 = vmatpush.msra.mxu0 %v966
      %1134 = vmatmul.f32.gmra.mxu0 %v1013
      %v1135 = vpop.f32.mrf.mxu0
      %v1136 = vadd.f32 %v1107, %v1135
      %1137 = vmatmul.f32.gmra.mxu0 %v1014
      %v1138 = vpop.f32.mrf.mxu0
      %v1139 = vadd.f32 %v1110, %v1138
      %1140 = vmatmul.f32.gmra.mxu0 %v1015
      %v1141 = vpop.f32.mrf.mxu0
      %v1142 = vadd.f32 %v1113, %v1141
      %1143 = vmatmul.f32.gmra.mxu0 %v1016
      %v1144 = vpop.f32.mrf.mxu0
      %v1145 = vadd.f32 %v1116, %v1144
      %1146 = vdwg.mxu0
      %s1147 = scalar_lea.vmem %s5, 16
      %v1148 = vld [vmem:[%s1147] sm:$0xff]
      %1149 = vmatpush.msra.mxu0 0.0
      %1150 = vmatpush.msra.mxu0 0.0
      %1151 = vmatpush.msra.mxu0 0.0
      %1152 = vmatpush.msra.mxu0 0.0
      %1153 = vmatpush.msra.mxu0 0.0
      %1154 = vmatpush.msra.mxu0 0.0
      %1155 = vmatpush.msra.mxu0 0.0
      %1156 = vmatpush.msra.mxu0 0.0
      %1157 = vmatpush.msra.mxu0 0.0
      %1158 = vmatpush.msra.mxu0 0.0
      %1159 = vmatpush.msra.mxu0 0.0
      %1160 = vmatpush.msra.mxu0 0.0
      %1161 = vmatpush.msra.mxu0 0.0
      %1162 = vmatpush.msra.mxu0 0.0
      %1163 = vmatpush.msra.mxu0 0.0
      %1164 = vmatpush.msra.mxu0 %v1148
      %1165 = vmatmul.f32.gmra.mxu0 %v901
      %v1166 = vpop.f32.mrf.mxu0
      %v1167 = vadd.f32 0.0, %v1166
      %1168 = vmatmul.f32.gmra.mxu0 %v904
      %v1169 = vpop.f32.mrf.mxu0
      %v1170 = vadd.f32 0.0, %v1169
      %1171 = vmatmul.f32.gmra.mxu0 %v907
      %v1172 = vpop.f32.mrf.mxu0
      %v1173 = vadd.f32 0.0, %v1172
      %1174 = vmatmul.f32.gmra.mxu0 %v910
      %v1175 = vpop.f32.mrf.mxu0
      %v1176 = vadd.f32 0.0, %v1175
      %1177 = vmatmul.f32.gmra.mxu0 %v913
      %v1178 = vpop.f32.mrf.mxu0
      %v1179 = vadd.f32 0.0, %v1178
      %1180 = vmatmul.f32.gmra.mxu0 %v916
      %v1181 = vpop.f32.mrf.mxu0
      %v1182 = vadd.f32 0.0, %v1181
      %1183 = vmatmul.f32.gmra.mxu0 %v919
      %v1184 = vpop.f32.mrf.mxu0
      %v1185 = vadd.f32 0.0, %v1184
      %1186 = vmatmul.f32.gmra.mxu0 %v922
      %v1187 = vpop.f32.mrf.mxu0
      %v1188 = vadd.f32 0.0, %v1187
      %1189 = vmatmul.f32.gmra.mxu0 %v925
      %v1190 = vpop.f32.mrf.mxu0
      %v1191 = vadd.f32 0.0, %v1190
      %1192 = vmatmul.f32.gmra.mxu0 %v928
      %v1193 = vpop.f32.mrf.mxu0
      %v1194 = vadd.f32 0.0, %v1193
      %1195 = vmatmul.f32.gmra.mxu0 %v931
      %v1196 = vpop.f32.mrf.mxu0
      %v1197 = vadd.f32 0.0, %v1196
      %1198 = vmatmul.f32.gmra.mxu0 %v934
      %v1199 = vpop.f32.mrf.mxu0
      %v1200 = vadd.f32 0.0, %v1199
      %1201 = vmatmul.f32.gmra.mxu0 %v937
      %v1202 = vpop.f32.mrf.mxu0
      %v1203 = vadd.f32 0.0, %v1202
      %1204 = vmatmul.f32.gmra.mxu0 %v940
      %v1205 = vpop.f32.mrf.mxu0
      %v1206 = vadd.f32 0.0, %v1205
      %1207 = vmatmul.f32.gmra.mxu0 %v943
      %v1208 = vpop.f32.mrf.mxu0
      %v1209 = vadd.f32 0.0, %v1208
      %1210 = vmatmul.f32.gmra.mxu0 %v946
      %v1211 = vpop.f32.mrf.mxu0
      %v1212 = vadd.f32 0.0, %v1211
      %1213 = vdwg.mxu0
      %s1214 = scalar_lea.vmem %s4, 64
      %v1215 = vld [vmem:[%s1214] sm:$0xff]
      %v1216 = vld [vmem:[%s1214 + $0x8] sm:$0xff]
      %v1217 = vld [vmem:[%s1214 + $0x10] sm:$0xff]
      %v1218 = vld [vmem:[%s1214 + $0x18] sm:$0xff]
      %1219 = vmatpush.msra.mxu0 %v1212
      %1220 = vmatpush.msra.mxu0 %v1209
      %1221 = vmatpush.msra.mxu0 %v1206
      %1222 = vmatpush.msra.mxu0 %v1203
      %1223 = vmatpush.msra.mxu0 %v1200
      %1224 = vmatpush.msra.mxu0 %v1197
      %1225 = vmatpush.msra.mxu0 %v1194
      %1226 = vmatpush.msra.mxu0 %v1191
      %1227 = vmatpush.msra.mxu0 %v1188
      %1228 = vmatpush.msra.mxu0 %v1185
      %1229 = vmatpush.msra.mxu0 %v1182
      %1230 = vmatpush.msra.mxu0 %v1179
      %1231 = vmatpush.msra.mxu0 %v1176
      %1232 = vmatpush.msra.mxu0 %v1173
      %1233 = vmatpush.msra.mxu0 %v1170
      %1234 = vmatpush.msra.mxu0 %v1167
      %1235 = vmatmul.f32.gmra.mxu0 %v1215
      %v1236 = vpop.f32.mrf.mxu0
      %v1237 = vadd.f32 0.0, %v1236
      %1238 = vmatmul.f32.gmra.mxu0 %v1216
      %v1239 = vpop.f32.mrf.mxu0
      %v1240 = vadd.f32 0.0, %v1239
      %1241 = vmatmul.f32.gmra.mxu0 %v1217
      %v1242 = vpop.f32.mrf.mxu0
      %v1243 = vadd.f32 0.0, %v1242
      %1244 = vmatmul.f32.gmra.mxu0 %v1218
      %v1245 = vpop.f32.mrf.mxu0
      %v1246 = vadd.f32 0.0, %v1245
      %1247 = vdwg.mxu0
      %v1248 = vadd.f32 %v1136, %v1237
      %v1249 = vadd.f32 %v1139, %v1240
      %v1250 = vadd.f32 %v1142, %v1243
      %v1251 = vadd.f32 %v1145, %v1246
      %v1252 = vld [vmem:[%s6] sm:$0xff]
      %v1253 = vld [vmem:[%s6 + $0x8] sm:$0xff]
      %v1254 = vld [vmem:[%s6 + $0x10] sm:$0xff]
      %v1255 = vld [vmem:[%s6 + $0x18] sm:$0xff]
      %1257 = vset.pattern.permute.xlu0 0
      %1258 = vperm.xlu0 %1257, %v1252
      %v1259 = vpop.permute.xlu0 %1258
      %1262 = vset.pattern.permute.xlu0 0
      %1263 = vperm.xlu0 %1262, %v1253
      %v1264 = vpop.permute.xlu0 %1263
      %1267 = vset.pattern.permute.xlu0 0
      %1268 = vperm.xlu0 %1267, %v1254
      %v1269 = vpop.permute.xlu0 %1268
      %1272 = vset.pattern.permute.xlu0 0
      %1273 = vperm.xlu0 %1272, %v1255
      %v1274 = vpop.permute.xlu0 %1273
      %v1276 = vadd.f32 %v1248, %v1259
      %v1277 = vadd.f32 %v1249, %v1264
      %v1278 = vadd.f32 %v1250, %v1269
      %v1279 = vadd.f32 %v1251, %v1274
      %v1280 = vmax.f32 %v1276, 0.0
      %v1281 = vmax.f32 %v1277, 0.0
      %v1282 = vmax.f32 %v1278, 0.0
      %v1283 = vmax.f32 %v1279, 0.0
      %vm1284 = vcmask 31744
      %1285 = vst.msk [vmem:[%s278] sm:$0xff] %vm1284, %v1280
      %1286 = vst.msk [vmem:[%s278 + $0x8] sm:$0xff] %vm1284, %v1281
      %1287 = vst.msk [vmem:[%s278 + $0x10] sm:$0xff] %vm1284, %v1282
      %1288 = vst.msk [vmem:[%s278 + $0x18] sm:$0xff] %vm1284, %v1283
      %p1289 = scmp.lt.s32.totalorder %s18, 1
      %s1290 = scalar_select %p1289, %s18, 1
      %s1291 = smul.addr %s1290, 4
      %s1292 = smul.addr %s1291, 8
      %s1293 = scalar_lea.vmem %s7, %s1292
      // Predicated region
      $region49: #{encoder_forward.1} parent=47 // pred_check
        %p1294 = pneg %p188
      $region50: #{encoder_forward.1} parent=47 // pred_check_branch
        %1296 = sbr.rel (%p1294) target = $region52
      $region51: #{encoder_forward.1} parent=47 // pred_region
        _
      $region52: #{encoder_forward.1} parent=47 // pred_fallthru
        _
    $region48: #{encoder_forward.1} parent=5 // pred_fallthru
      _
    %p1297 = scmp.le.s32.totalorder 2, %s13
    // Predicated region
    $region53: #{encoder_forward.1} parent=5 // pred_check
      %p1298 = pneg %p1297
    $region54: #{encoder_forward.1} parent=5 // pred_check_branch
      %1300 = sbr.rel (%p1298) target = $region56
    $region55: #{encoder_forward.1} parent=5 // pred_region
      %s1301 = ssub.s32 %s13, 2
      // Predicated region
      $region57: #{encoder_forward.1} parent=55 // pred_check
        %p1302 = pneg %p194
      $region58: #{encoder_forward.1} parent=55 // pred_check_branch
        %1304 = sbr.rel (%p1302) target = $region60
      $region59: #{encoder_forward.1} parent=55 // pred_region
        %p1305 = scmp.lt.s32.totalorder %s19, 1
        %s1306 = scalar_select %p1305, %s19, 1
        %s1307 = smul.addr %s1306, 4
        %s1308 = smul.addr %s1307, 8
        %s1309 = scalar_lea.vmem %s7, %s1308
      $region60: #{encoder_forward.1} parent=55 // pred_fallthru
        _
    $region56: #{encoder_forward.1} parent=5 // pred_fallthru
      _
  $region6: #{encoder_forward.1} parent=0 // loop_footer
    %s17 = sadd.s32 1, %s13
  $region7: #{encoder_forward.1} parent=0 // loop_footer_branch
    %12 = sbr.rel target = $region3
  $region8: #{encoder_forward.1} parent=0 // loop_exit
    _

</llo_original>
